<compile_context>
chip_gen: v7x
topology: tpu7x:2x2x1
jax: 0.10.0
libtpu: 0.0.40
codegen_flags: <defaults>
</compile_context>

<pallas_src>
import functools

import jax
import jax.numpy as jnp
from jax.experimental import pallas as pl
from jax.experimental.pallas import tpu as pltpu

_LANE = 128
_SUBLANE = 8
_NUM_CORES = 2                         # leading "parallel" axis; sequential on 1-TC chips
_TARGET_BLOCK_BYTES = 2 * 1024 * 1024  # per-input, per-buffer block (4096 rows @ f32)
_VMEM_LIMIT_BYTES = 32 * 1024 * 1024   # 8 MiB double-buffered inputs + f32 temporaries


def _nrmse_kernel(y_ref, yhat_ref, num_ref, den_ref, *,
                  block_rows, total_rows, blocks_per_core):
    c = pl.program_id(0)   # core-split axis ("parallel")
    k = pl.program_id(1)   # reduction axis ("arbitrary")

    # The output blocks keep the same block index across the whole k axis, so
    # they stay resident in VMEM and double as the per-core accumulators.
    @pl.when(k == 0)
    def _():
        num_ref[...] = jnp.zeros_like(num_ref)
        den_ref[...] = jnp.zeros_like(den_ref)

    # Logical (unclamped) block id -> absolute starting row of this block.
    gi = c * blocks_per_core + k
    row_start = gi * block_rows

    y = y_ref[...].astype(jnp.float32)
    yhat = yhat_ref[...].astype(jnp.float32)
    d = yhat - y

    groups = block_rows // _SUBLANE

    def _accumulate(dd, yy):
        # (block_rows,128) -> (groups,8,128) is an (8,128)-tile-aligned (free)
        # reshape; the axis-0 sum is plain vreg-wise VPU adds into the
        # vreg-sized resident accumulators.
        num_ref[0, :, :] += dd.reshape(groups, _SUBLANE, _LANE).sum(axis=0)
        den_ref[0, :, :] += yy.reshape(groups, _SUBLANE, _LANE).sum(axis=0)

    is_full = row_start + block_rows <= total_rows

    @pl.when(is_full)
    def _():
        # Hot path: no masking work at all.
        _accumulate(d * d, y * y)

    @pl.when(jnp.logical_not(is_full))
    def _():
        # Cold path: ragged boundary block or a fully clamped duplicate block
        # (which contributes exactly zero).  Garbage rows are removed by the
        # select, so nothing bad can propagate.
        row_ids = row_start + jax.lax.broadcasted_iota(
            jnp.int32, (block_rows, _LANE), 0)
        valid = row_ids < total_rows
        _accumulate(jnp.where(valid, d * d, 0.0),
                    jnp.where(valid, y * y, 0.0))


def _in_index_map(c, k, *, blocks_per_core, last_block):
    gi = c * blocks_per_core + k
    # Clamp out-of-range logical blocks.  blocks_per_core is balanced so the
    # clamp target equals that core's previous block index -> Pallas skips the
    # re-DMA; the kernel masks its contribution to zero.
    return (jnp.minimum(gi, last_block), 0)


def _partial_sums_pallas(y2, yhat2, rows, block_rows):
    total_blocks = pl.cdiv(rows, block_rows)
    num_cores = _NUM_CORES if total_blocks >= _NUM_CORES else 1
    blocks_per_core = pl.cdiv(total_blocks, num_cores)

    kernel = functools.partial(
        _nrmse_kernel,
        block_rows=block_rows,
        total_rows=rows,
        blocks_per_core=blocks_per_core,
    )
    in_map = functools.partial(
        _in_index_map,
        blocks_per_core=blocks_per_core,
        last_block=total_blocks - 1,
    )

    num_part, den_part = pl.pallas_call(
        kernel,
        out_shape=(
            jax.ShapeDtypeStruct((num_cores, _SUBLANE, _LANE), jnp.float32),
            jax.ShapeDtypeStruct((num_cores, _SUBLANE, _LANE), jnp.float32),
        ),
        grid_spec=pltpu.PrefetchScalarGridSpec(
            num_scalar_prefetch=0,
            grid=(num_cores, blocks_per_core),
            in_specs=[
                pl.BlockSpec((block_rows, _LANE), in_map),
                pl.BlockSpec((block_rows, _LANE), in_map),
            ],
            out_specs=[
                pl.BlockSpec((1, _SUBLANE, _LANE), lambda c, k: (c, 0, 0)),
                pl.BlockSpec((1, _SUBLANE, _LANE), lambda c, k: (c, 0, 0)),
            ],
        ),
        compiler_params=pltpu.CompilerParams(
            dimension_semantics=("parallel", "arbitrary"),
            vmem_limit_bytes=_VMEM_LIMIT_BYTES,
        ),
    )(y2, yhat2)

    return jnp.sum(num_part), jnp.sum(den_part)


def nrmse_loss(y, yhat, eps: float = 1e-9):
    assert y.shape == yhat.shape, "y and yhat must have the same shape"
    if y.dtype != yhat.dtype:
        common = jnp.promote_types(y.dtype, yhat.dtype)
        y, yhat = y.astype(common), yhat.astype(common)

    y_flat = y.reshape(-1)            # native dtype; upcast happens in-kernel
    yhat_flat = yhat.reshape(-1)
    n = y_flat.shape[0]

    itemsize = jnp.dtype(y_flat.dtype).itemsize
    sub_mult = max(_SUBLANE, 32 // itemsize)   # dtype min tile: 8/16/32 sublanes
    chunk = sub_mult * _LANE
    n_aligned = (n // chunk) * chunk
    rows = n_aligned // _LANE                  # multiple of sub_mult (and of 8)

    num_sum = jnp.float32(0.0)
    den_sum = jnp.float32(0.0)

    if rows > 0:
        block_cap = max(sub_mult, _TARGET_BLOCK_BYTES // (_LANE * itemsize))
        block_rows = min(rows, block_cap)      # both are multiples of sub_mult
        if n_aligned == n:
            # Fully aligned: pure (free) reshapes, no extra HBM traffic.
            y2 = y_flat.reshape(rows, _LANE)
            yhat2 = yhat_flat.reshape(rows, _LANE)
        else:
            # TODO(synk): the aligned-prefix slice may still materialize a copy
            # for unaligned element counts; avoiding it entirely needs manual
            # flat-offset DMA (memory_space=pl.ANY), not worth it here.
            y2 = y_flat[:n_aligned].reshape(rows, _LANE)
            yhat2 = yhat_flat[:n_aligned].reshape(rows, _LANE)
        num_sum, den_sum = _partial_sums_pallas(y2, yhat2, rows, block_rows)

    if n_aligned != n:
        # Sub-chunk tail (< sub_mult*128 elements): tiny plain-JAX reduction.
        y_t = y_flat[n_aligned:].astype(jnp.float32)
        yhat_t = yhat_flat[n_aligned:].astype(jnp.float32)
        d_t = yhat_t - y_t
        num_sum = num_sum + jnp.sum(d_t * d_t)
        den_sum = den_sum + jnp.sum(y_t * y_t)

    num = jnp.sqrt(num_sum + jnp.float32(eps))
    den = jnp.sqrt(den_sum + jnp.float32(eps))
    return num / den


def _nrmse_ref(y, yhat, eps=1e-9):
    y = y.astype(jnp.float32)
    yhat = yhat.astype(jnp.float32)
    num = jnp.sqrt(jnp.sum((yhat - y) ** 2) + eps)
    den = jnp.sqrt(jnp.sum(y ** 2) + eps)
    return num / den


if __name__ == "__main__":
    key = jax.random.PRNGKey(0)
    k1, k2 = jax.random.split(key)

    # Primary example: NCHW-like image-regression loss input (fully aligned,
    # single-block fast path).
    y = jax.random.normal(k1, (2, 4, 16, 16), dtype=jnp.float32)
    yhat = y + 0.1 * jax.random.normal(k2, (2, 4, 16, 16), dtype=jnp.float32)
    loss = nrmse_loss(y, yhat)
    jax.block_until_ready(loss)
    ref = _nrmse_ref(y, yhat)
    assert jnp.allclose(loss, ref, rtol=1e-4, atol=1e-6), (loss, ref)

    # Extra self-checks:
    #  (48, 128, 100): multi-block 2-core grid with a ragged (masked) boundary
    #                  block; (3, 5, 7, 11): sub-chunk tail handled in JAX.
    for idx, shape in enumerate(((48, 128, 100), (3, 5, 7, 11))):
        ka, kb = jax.random.split(jax.random.fold_in(key, idx + 1))
        yy = jax.random.normal(ka, shape, dtype=jnp.float32)
        yh = yy + 0.1 * jax.random.normal(kb, shape, dtype=jnp.float32)
        out = nrmse_loss(yy, yh)
        jax.block_until_ready(out)
        ref2 = _nrmse_ref(yy, yh)
        assert jnp.allclose(out, ref2, rtol=1e-4, atol=1e-6), (shape, out, ref2)

    print("KERNEL_OK")
</pallas_src>

<mosaic_0001>
module attributes {stable_mosaic.version = 11 : i64} {
  func.func @_nrmse_kernel(%arg0: i32, %arg1: i32, %arg2: memref<16x128xf32, #tpu.memory_space<vmem>>, %arg3: memref<16x128xf32, #tpu.memory_space<vmem>>, %arg4: memref<1x8x128xf32, #tpu.memory_space<vmem>>, %arg5: memref<1x8x128xf32, #tpu.memory_space<vmem>>) attributes {dimension_semantics = [#tpu.dimension_semantics<parallel>, #tpu.dimension_semantics<arbitrary>], iteration_bounds = array<i64: 1, 1>, scalar_prefetch = 0 : i64, scratch_operands = 0 : i64, tpu.core_type = #tpu.core_type<tc>, window_params = [{transform_indices = @transform_0, window_bounds = array<i64: 16, 128>}, {transform_indices = @transform_1, window_bounds = array<i64: 16, 128>}, {transform_indices = @transform_2, window_bounds = array<i64: 1, 8, 128>}, {transform_indices = @transform_3, window_bounds = array<i64: 1, 8, 128>}]} {
    %c0_i32 = arith.constant 0 : i32
    %0 = arith.cmpi eq, %arg1, %c0_i32 : i32
    %1 = arith.extui %0 : i1 to i32
    %c0_i32_0 = arith.constant 0 : i32
    %2 = arith.cmpi ne, %1, %c0_i32_0 : i32
    scf.if %2 {
      %cst = arith.constant 0.000000e+00 : f32
      %16 = vector.broadcast %cst : f32 to vector<1x8x128xf32>
      %c0_8 = arith.constant 0 : index
      %c0_9 = arith.constant 0 : index
      %c0_10 = arith.constant 0 : index
      %17 = vector.load %arg4[%c0_8, %c0_9, %c0_10] : memref<1x8x128xf32, #tpu.memory_space<vmem>>, vector<1x8x128xf32>
      tpu.vector_store %arg4[%c0_8, %c0_9, %c0_10], %16 {strides = array<i32>} : memref<1x8x128xf32, #tpu.memory_space<vmem>>, vector<1x8x128xf32>,
      %cst_11 = arith.constant 0.000000e+00 : f32
      %18 = vector.broadcast %cst_11 : f32 to vector<1x8x128xf32>
      %c0_12 = arith.constant 0 : index
      %c0_13 = arith.constant 0 : index
      %c0_14 = arith.constant 0 : index
      %19 = vector.load %arg5[%c0_12, %c0_13, %c0_14] : memref<1x8x128xf32, #tpu.memory_space<vmem>>, vector<1x8x128xf32>
      tpu.vector_store %arg5[%c0_12, %c0_13, %c0_14], %18 {strides = array<i32>} : memref<1x8x128xf32, #tpu.memory_space<vmem>>, vector<1x8x128xf32>,
    } else {
    }
    %c1_i32 = arith.constant 1 : i32
    %3 = arith.muli %arg0, %c1_i32 : i32
    %4 = arith.addi %3, %arg1 : i32
    %c16_i32 = arith.constant 16 : i32
    %5 = arith.muli %4, %c16_i32 : i32
    %c0 = arith.constant 0 : index
    %c0_1 = arith.constant 0 : index
    %6 = vector.load %arg2[%c0, %c0_1] : memref<16x128xf32, #tpu.memory_space<vmem>>, vector<16x128xf32>
    %c0_2 = arith.constant 0 : index
    %c0_3 = arith.constant 0 : index
    %7 = vector.load %arg3[%c0_2, %c0_3] : memref<16x128xf32, #tpu.memory_space<vmem>>, vector<16x128xf32>
    %8 = arith.subf %7, %6 : vector<16x128xf32>
    %c16_i32_4 = arith.constant 16 : i32
    %9 = arith.addi %5, %c16_i32_4 : i32
    %c16_i32_5 = arith.constant 16 : i32
    %10 = arith.cmpi sle, %9, %c16_i32_5 : i32
    %11 = arith.extui %10 : i1 to i32
    %c0_i32_6 = arith.constant 0 : i32
    %12 = arith.cmpi ne, %11, %c0_i32_6 : i32
    scf.if %12 {
      %16 = arith.mulf %8, %8 : vector<16x128xf32>
      %17 = arith.mulf %6, %6 : vector<16x128xf32>
      %c0_8 = arith.constant 0 : index
      %c0_9 = arith.constant 0 : index
      %c0_10 = arith.constant 0 : index
      %18 = vector.load %arg4[%c0_8, %c0_9, %c0_10] : memref<1x8x128xf32, #tpu.memory_space<vmem>>, vector<1x8x128xf32>
      %19 = vector.shape_cast %18 : vector<1x8x128xf32> to vector<8x128xf32>
      %20 = vector.shape_cast %16 : vector<16x128xf32> to vector<2x8x128xf32>
      %cst = arith.constant dense<0.000000e+00> : vector<8x128xf32>
      %21 = vector.multi_reduction <add>, %20, %cst [0] : vector<2x8x128xf32> to vector<8x128xf32>
      %22 = arith.addf %19, %21 : vector<8x128xf32>
      %c0_11 = arith.constant 0 : index
      %c0_12 = arith.constant 0 : index
      %c0_13 = arith.constant 0 : index
      %23 = vector.load %arg4[%c0_11, %c0_12, %c0_13] : memref<1x8x128xf32, #tpu.memory_space<vmem>>, vector<1x8x128xf32>
      %24 = vector.shape_cast %23 : vector<1x8x128xf32> to vector<8x128xf32>
      %25 = vector.shape_cast %22 : vector<8x128xf32> to vector<1x8x128xf32>
      tpu.vector_store %arg4[%c0_11, %c0_12, %c0_13], %25 {strides = array<i32>} : memref<1x8x128xf32, #tpu.memory_space<vmem>>, vector<1x8x128xf32>,
      %c0_14 = arith.constant 0 : index
      %c0_15 = arith.constant 0 : index
      %c0_16 = arith.constant 0 : index
      %26 = vector.load %arg5[%c0_14, %c0_15, %c0_16] : memref<1x8x128xf32, #tpu.memory_space<vmem>>, vector<1x8x128xf32>
      %27 = vector.shape_cast %26 : vector<1x8x128xf32> to vector<8x128xf32>
      %28 = vector.shape_cast %17 : vector<16x128xf32> to vector<2x8x128xf32>
      %cst_17 = arith.constant dense<0.000000e+00> : vector<8x128xf32>
      %29 = vector.multi_reduction <add>, %28, %cst_17 [0] : vector<2x8x128xf32> to vector<8x128xf32>
      %30 = arith.addf %27, %29 : vector<8x128xf32>
      %c0_18 = arith.constant 0 : index
      %c0_19 = arith.constant 0 : index
      %c0_20 = arith.constant 0 : index
      %31 = vector.load %arg5[%c0_18, %c0_19, %c0_20] : memref<1x8x128xf32, #tpu.memory_space<vmem>>, vector<1x8x128xf32>
      %32 = vector.shape_cast %31 : vector<1x8x128xf32> to vector<8x128xf32>
      %33 = vector.shape_cast %30 : vector<8x128xf32> to vector<1x8x128xf32>
      tpu.vector_store %arg5[%c0_18, %c0_19, %c0_20], %33 {strides = array<i32>} : memref<1x8x128xf32, #tpu.memory_space<vmem>>, vector<1x8x128xf32>,
    } else {
    }
    %true = arith.constant true
    %13 = arith.xori %10, %true : i1
    %14 = arith.extui %13 : i1 to i32
    %c0_i32_7 = arith.constant 0 : i32
    %15 = arith.cmpi ne, %14, %c0_i32_7 : i32
    scf.if %15 {
      %16 = tpu.iota {dimensions = array<i32: 0>} : vector<16x128xi32>
      %17 = vector.broadcast %5 : i32 to vector<16x128xi32>
      %18 = arith.addi %17, %16 : vector<16x128xi32>
      %c16_i32_8 = arith.constant 16 : i32
      %19 = vector.broadcast %c16_i32_8 : i32 to vector<16x128xi32>
      %20 = arith.cmpi slt, %18, %19 : vector<16x128xi32>
      %21 = arith.mulf %8, %8 : vector<16x128xf32>
      %cst = arith.constant 0.000000e+00 : f32
      %22 = vector.broadcast %cst : f32 to vector<16x128xf32>
      %23 = arith.select %20, %21, %22 : vector<16x128xi1>, vector<16x128xf32>
      %24 = arith.mulf %6, %6 : vector<16x128xf32>
      %cst_9 = arith.constant 0.000000e+00 : f32
      %25 = vector.broadcast %cst_9 : f32 to vector<16x128xf32>
      %26 = arith.select %20, %24, %25 : vector<16x128xi1>, vector<16x128xf32>
      %c0_10 = arith.constant 0 : index
      %c0_11 = arith.constant 0 : index
      %c0_12 = arith.constant 0 : index
      %27 = vector.load %arg4[%c0_10, %c0_11, %c0_12] : memref<1x8x128xf32, #tpu.memory_space<vmem>>, vector<1x8x128xf32>
      %28 = vector.shape_cast %27 : vector<1x8x128xf32> to vector<8x128xf32>
      %29 = vector.shape_cast %23 : vector<16x128xf32> to vector<2x8x128xf32>
      %cst_13 = arith.constant dense<0.000000e+00> : vector<8x128xf32>
      %30 = vector.multi_reduction <add>, %29, %cst_13 [0] : vector<2x8x128xf32> to vector<8x128xf32>
      %31 = arith.addf %28, %30 : vector<8x128xf32>
      %c0_14 = arith.constant 0 : index
      %c0_15 = arith.constant 0 : index
      %c0_16 = arith.constant 0 : index
      %32 = vector.load %arg4[%c0_14, %c0_15, %c0_16] : memref<1x8x128xf32, #tpu.memory_space<vmem>>, vector<1x8x128xf32>
      %33 = vector.shape_cast %32 : vector<1x8x128xf32> to vector<8x128xf32>
      %34 = vector.shape_cast %31 : vector<8x128xf32> to vector<1x8x128xf32>
      tpu.vector_store %arg4[%c0_14, %c0_15, %c0_16], %34 {strides = array<i32>} : memref<1x8x128xf32, #tpu.memory_space<vmem>>, vector<1x8x128xf32>,
      %c0_17 = arith.constant 0 : index
      %c0_18 = arith.constant 0 : index
      %c0_19 = arith.constant 0 : index
      %35 = vector.load %arg5[%c0_17, %c0_18, %c0_19] : memref<1x8x128xf32, #tpu.memory_space<vmem>>, vector<1x8x128xf32>
      %36 = vector.shape_cast %35 : vector<1x8x128xf32> to vector<8x128xf32>
      %37 = vector.shape_cast %26 : vector<16x128xf32> to vector<2x8x128xf32>
      %cst_20 = arith.constant dense<0.000000e+00> : vector<8x128xf32>
      %38 = vector.multi_reduction <add>, %37, %cst_20 [0] : vector<2x8x128xf32> to vector<8x128xf32>
      %39 = arith.addf %36, %38 : vector<8x128xf32>
      %c0_21 = arith.constant 0 : index
      %c0_22 = arith.constant 0 : index
      %c0_23 = arith.constant 0 : index
      %40 = vector.load %arg5[%c0_21, %c0_22, %c0_23] : memref<1x8x128xf32, #tpu.memory_space<vmem>>, vector<1x8x128xf32>
      %41 = vector.shape_cast %40 : vector<1x8x128xf32> to vector<8x128xf32>
      %42 = vector.shape_cast %39 : vector<8x128xf32> to vector<1x8x128xf32>
      tpu.vector_store %arg5[%c0_21, %c0_22, %c0_23], %42 {strides = array<i32>} : memref<1x8x128xf32, #tpu.memory_space<vmem>>, vector<1x8x128xf32>,
    } else {
    }
    return
  }
  func.func @transform_0(%arg0: i32, %arg1: i32) -> (i32, i32) {
    %c1_i32 = arith.constant 1 : i32
    %0 = arith.muli %arg0, %c1_i32 : i32
    %1 = arith.addi %0, %arg1 : i32
    %c0_i32 = arith.constant 0 : i32
    %2 = arith.minsi %1, %c0_i32 : i32
    %c0_i32_0 = arith.constant 0 : i32
    %c0_i32_1 = arith.constant 0 : i32
    return %2, %c0_i32_0 : i32, i32
  }
  func.func @transform_1(%arg0: i32, %arg1: i32) -> (i32, i32) {
    %c1_i32 = arith.constant 1 : i32
    %0 = arith.muli %arg0, %c1_i32 : i32
    %1 = arith.addi %0, %arg1 : i32
    %c0_i32 = arith.constant 0 : i32
    %2 = arith.minsi %1, %c0_i32 : i32
    %c0_i32_0 = arith.constant 0 : i32
    %c0_i32_1 = arith.constant 0 : i32
    return %2, %c0_i32_0 : i32, i32
  }
  func.func @transform_2(%arg0: i32, %arg1: i32) -> (i32, i32, i32) {
    %c0_i32 = arith.constant 0 : i32
    %c0_i32_0 = arith.constant 0 : i32
    %c0_i32_1 = arith.constant 0 : i32
    return %arg0, %c0_i32, %c0_i32_0 : i32, i32, i32
  }
  func.func @transform_3(%arg0: i32, %arg1: i32) -> (i32, i32, i32) {
    %c0_i32 = arith.constant 0 : i32
    %c0_i32_0 = arith.constant 0 : i32
    %c0_i32_1 = arith.constant 0 : i32
    return %arg0, %c0_i32, %c0_i32_0 : i32, i32, i32
  }
}

</mosaic_0001>

<llo_original>
// kernel: tpu_custom_call.1
$region0: #{tpu_custom_call.1}
  #allocation0 [shape = 'u32[]', space=smem, size = 0x4, offset = 0x4, fixed_abs, tag = 'smem constant byte address 0x4 - core index']
  #allocation1 [shape = 'u32[144,128]{1,0:T(1,128)}', space=vmem, size = 0x12000, scoped, tag = 'internal scratch']
  %s0 = inlined_call_operand.hbm [shape: f32[16,128], index: 0, kind: input, shape index: {}]
  %s1 = inlined_call_operand.hbm [shape: f32[16,128], index: 1, kind: input, shape index: {}]
  %s2 = inlined_call_operand.hbm [shape: f32[1,8,128], index: 2, kind: output, shape index: {0}]
  %s3 = inlined_call_operand.hbm [shape: f32[1,8,128], index: 3, kind: output, shape index: {1}]
  %4 = xla_tuple %s2, %s3
  %s5 = sld [smem:[#allocation0]]
  $region46: #{tpu_custom_call.1} parent=0
    _
  %s7 = ssub.s32 1, %s5
  %s8 = scalar_select 0, %s7, %s5
  $region1: #{tpu_custom_call.1} parent=0
    #allocation2 [shape = 'u8[8192]{0}', space=vmem, size = 0x2000, scoped, tag = 'input window, operand 0, single buffered']
    #allocation3 [shape = 's32[1]{0}', space=sflag, size = 0x4, scoped, tag = 'scoped memory for tpu_custom_call.1']
    #allocation4 [shape = 's32[1]{0}', space=sflag, size = 0x4, scoped, tag = 'scoped memory for tpu_custom_call.1']
    #allocation5 [shape = 'u8[8192]{0}', space=vmem, size = 0x2000, scoped, tag = 'input window, operand 1, single buffered']
    #allocation6 [shape = 's32[1]{0}', space=sflag, size = 0x4, scoped, tag = 'scoped memory for tpu_custom_call.1']
    #allocation7 [shape = 'u8[4096]{0}', space=vmem, size = 0x1000, scoped, tag = 'output window, operand 0, single buffered']
    #allocation8 [shape = 'u8[4096]{0}', space=vmem, size = 0x1000, scoped, tag = 'output window, operand 1, single buffered']
    #allocation9 [shape = 's32[1]{0}', space=sflag, size = 0x4, scoped, tag = 'scoped memory for tpu_custom_call.1']
    %9 = vsyncpa [#allocation3], 0
    %10 = vsyncpa [#allocation6], 0
    %11 = vsyncpa [#allocation4], 0
    %12 = vsyncpa [#allocation9], 0
    // Predicated region
    $region2: #{tpu_custom_call.1} parent=1 // pred_check
      _
    $region3: #{tpu_custom_call.1} parent=1 // pred_check_branch
      %14 = sbr.rel (0) target = $region5
    $region4: #{tpu_custom_call.1} parent=1 // pred_region
      %s15 = sadd.s32 0, 0
      %p16 = scmp.lt.s32.totalorder %s15, 0
      %s17 = scalar_select %p16, %s15, 0
      %s18 = smul.u32 2, %s17
      %s20 = ssub.s32 256, 256
      %21 = vsyncadd [#allocation3], %s20
      %s22 = smul.addr %s18, 128
      %s23 = scalar_lea.hbm %s0, %s22
      %s24 = sshll.u32 [#allocation2], 4
      %s25 = int_to_ptr.vmem [resolvable:$true] %s24
      %30 = dma.hbm_to_vmem [thread:$0]  %s23, 256, %s25, [#allocation3], 128, 128, 8
    $region5: #{tpu_custom_call.1} parent=1 // pred_fallthru
      _
    // Predicated region
    $region6: #{tpu_custom_call.1} parent=1 // pred_check
      _
    $region7: #{tpu_custom_call.1} parent=1 // pred_check_branch
      %32 = sbr.rel (0) target = $region9
    $region8: #{tpu_custom_call.1} parent=1 // pred_region
      %s33 = sadd.s32 0, 0
      %p34 = scmp.lt.s32.totalorder %s33, 0
      %s35 = scalar_select %p34, %s33, 0
      %s36 = smul.u32 2, %s35
      %s38 = ssub.s32 256, 256
      %39 = vsyncadd [#allocation6], %s38
      %s40 = smul.addr %s36, 128
      %s41 = scalar_lea.hbm %s1, %s40
      %s42 = sshll.u32 [#allocation5], 4
      %s43 = int_to_ptr.vmem [resolvable:$true] %s42
      %48 = dma.hbm_to_vmem [thread:$0]  %s41, 256, %s43, [#allocation6], 128, 128, 8
    $region9: #{tpu_custom_call.1} parent=1 // pred_fallthru
      _
    // Predicated region
    $region10: #{tpu_custom_call.1} parent=1 // pred_check
      _
    $region11: #{tpu_custom_call.1} parent=1 // pred_check_branch
      %50 = sbr.rel (0) target = $region13
    $region12: #{tpu_custom_call.1} parent=1 // pred_region
      %51 = dma.done [#allocation3], 256
    $region13: #{tpu_custom_call.1} parent=1 // pred_fallthru
      _
    // Predicated region
    $region14: #{tpu_custom_call.1} parent=1 // pred_check
      _
    $region15: #{tpu_custom_call.1} parent=1 // pred_check_branch
      %53 = sbr.rel (0) target = $region17
    $region16: #{tpu_custom_call.1} parent=1 // pred_region
      %54 = dma.done [#allocation6], 256
    $region17: #{tpu_custom_call.1} parent=1 // pred_fallthru
      _
    %s55 = sadd.s32 0, 0
    %p56 = scmp.lt.s32.totalorder %s55, 0
    %s57 = scalar_select %p56, %s55, 0
    %s58 = smul.u32 2, %s57
    %s59 = sadd.s32 0, 0
    %p60 = scmp.lt.s32.totalorder %s59, 0
    %s61 = scalar_select %p60, %s59, 0
    %s62 = smul.u32 2, %s61
    %p63 = scmp.eq.s32.totalorder 0, 0
    // Predicated region
    $region18: #{tpu_custom_call.1} parent=1 // pred_check
      %p64 = pneg %p63
    $region19: #{tpu_custom_call.1} parent=1 // pred_check_branch
      %66 = sbr.rel (%p64) target = $region21
    $region20: #{tpu_custom_call.1} parent=1 // pred_region
      %67 = vst [vmem:[#allocation7] sm:$0xff] 0.0
      %68 = vst [vmem:[#allocation8] sm:$0xff] 0.0
    $region21: #{tpu_custom_call.1} parent=1 // pred_fallthru
      _
    %s69 = sadd.s32 0, 0
    %s70 = smul.u32 %s69, 16
    %v71 = vld [vmem:[#allocation2] sm:$0xff]
    %v72 = vld [vmem:[#allocation2 + $0x8] sm:$0xff]
    %v73 = vld [vmem:[#allocation5] sm:$0xff]
    %v74 = vld [vmem:[#allocation5 + $0x8] sm:$0xff]
    %v75 = vsub.f32 %v73, %v71
    %v76 = vsub.f32 %v74, %v72
    %s77 = sadd.s32 %s70, 16
    %p78 = scmp.le.s32.totalorder %s77, 16
    // Predicated region
    $region22: #{tpu_custom_call.1} parent=1 // pred_check
      %p79 = pneg %p78
    $region23: #{tpu_custom_call.1} parent=1 // pred_check_branch
      %81 = sbr.rel (%p79) target = $region25
    $region24: #{tpu_custom_call.1} parent=1 // pred_region
      %v82 = vmul.f32 %v75, %v75
      %v83 = vmul.f32 %v76, %v76
      %v84 = vmul.f32 %v71, %v71
      %v85 = vmul.f32 %v72, %v72
      %v86 = vld [vmem:[#allocation7] sm:$0xff]
      %v87 = vadd.f32 %v82, %v83
      %v88 = vadd.f32 %v86, %v87
      %89 = vst [vmem:[#allocation7] sm:$0xff] %v88
      %v90 = vld [vmem:[#allocation8] sm:$0xff]
      %v91 = vadd.f32 %v84, %v85
      %v92 = vadd.f32 %v90, %v91
      %93 = vst [vmem:[#allocation8] sm:$0xff] %v92
    $region25: #{tpu_custom_call.1} parent=1 // pred_fallthru
      _
    %p94 = scmp.gt.s32.totalorder %s77, 16
    // Predicated region
    $region26: #{tpu_custom_call.1} parent=1 // pred_check
      %p95 = pneg %p94
    $region27: #{tpu_custom_call.1} parent=1 // pred_check_branch
      %97 = sbr.rel (%p95) target = $region29
    $region28: #{tpu_custom_call.1} parent=1 // pred_region
      %v98 = vlaneseq
      %v99 = vshrl.u32 %v98, 7
      %v100 = vadd.s32 %v99, 8
      %v101 = vstv %s70
      %v102 = vadd.s32 %v101, %v99
      %v103 = vadd.s32 %v101, %v100
      %vm104 = vcmp.lt.s32.totalorder %v102, 16
      %vm105 = vcmp.lt.s32.totalorder %v103, 16
      %v106 = vmul.f32 %v75, %v75
      %v107 = vmul.f32 %v76, %v76
      %v108 = vsel %vm104, %v106, 0.0
      %v109 = vsel %vm105, %v107, 0.0
      %v110 = vmul.f32 %v71, %v71
      %v111 = vmul.f32 %v72, %v72
      %v112 = vsel %vm104, %v110, 0.0
      %v113 = vsel %vm105, %v111, 0.0
      %v114 = vld [vmem:[#allocation7] sm:$0xff]
      %v115 = vadd.f32 %v108, %v109
      %v116 = vadd.f32 %v114, %v115
      %117 = vst [vmem:[#allocation7] sm:$0xff] %v116
      %v118 = vld [vmem:[#allocation8] sm:$0xff]
      %v119 = vadd.f32 %v112, %v113
      %v120 = vadd.f32 %v118, %v119
      %121 = vst [vmem:[#allocation8] sm:$0xff] %v120
    $region29: #{tpu_custom_call.1} parent=1 // pred_fallthru
      _
    // Predicated region
    $region30: #{tpu_custom_call.1} parent=1 // pred_check
      _
    $region31: #{tpu_custom_call.1} parent=1 // pred_check_branch
      %123 = sbr.rel (0) target = $region33
    $region32: #{tpu_custom_call.1} parent=1 // pred_region
      %s125 = ssub.s32 128, 128
      %126 = vsyncadd [#allocation4], %s125
      %s128 = sshll.u32 [#allocation7], 4
      %s129 = int_to_ptr.vmem [resolvable:$true] %s128
      %131 = dma.vmem_to_hbm [thread:$0]  %s129, 128, %s2, [#allocation4]
    $region33: #{tpu_custom_call.1} parent=1 // pred_fallthru
      _
    // Predicated region
    $region34: #{tpu_custom_call.1} parent=1 // pred_check
      _
    $region35: #{tpu_custom_call.1} parent=1 // pred_check_branch
      %133 = sbr.rel (0) target = $region37
    $region36: #{tpu_custom_call.1} parent=1 // pred_region
      %s135 = ssub.s32 128, 128
      %136 = vsyncadd [#allocation9], %s135
      %s138 = sshll.u32 [#allocation8], 4
      %s139 = int_to_ptr.vmem [resolvable:$true] %s138
      %141 = dma.vmem_to_hbm [thread:$0]  %s139, 128, %s3, [#allocation9]
    $region37: #{tpu_custom_call.1} parent=1 // pred_fallthru
      _
    // Predicated region
    $region38: #{tpu_custom_call.1} parent=1 // pred_check
      _
    $region39: #{tpu_custom_call.1} parent=1 // pred_check_branch
      %143 = sbr.rel (0) target = $region41
    $region40: #{tpu_custom_call.1} parent=1 // pred_region
      %144 = dma.done [#allocation4], 128
    $region41: #{tpu_custom_call.1} parent=1 // pred_fallthru
      _
    // Predicated region
    $region42: #{tpu_custom_call.1} parent=1 // pred_check
      _
    $region43: #{tpu_custom_call.1} parent=1 // pred_check_branch
      %146 = sbr.rel (0) target = $region45
    $region44: #{tpu_custom_call.1} parent=1 // pred_region
      %147 = dma.done [#allocation9], 128
    $region45: #{tpu_custom_call.1} parent=1 // pred_fallthru
      _
    %148 = vsyncpa [#allocation3], 1
    %149 = vsyncpa [#allocation6], 1
    %150 = vsyncpa [#allocation4], 1
    %151 = vsyncpa [#allocation9], 1

</llo_original>
